<compile_context>
chip_gen: v6e
topology: v6e:2x2x1
jax: 0.10.0
libtpu: 0.0.40
codegen_flags: <defaults>
</compile_context>

<pallas_src>
import jax
import jax.numpy as jnp
from jax.experimental import pallas as pl
from jax.experimental.pallas import tpu as pltpu


def _round_up(x: int, m: int) -> int:
    return ((x + m - 1) // m) * m


def _pick_tile_n(n: int, c_pad: int, itemsize: int) -> int:
    # Budget ~4 MiB per logits tile => 2x double-buffered tiles stay well under
    # the smallest default scoped-VMEM window (16 MiB on v5e, 32 MiB v6e/v7x).
    budget = 4 * 1024 * 1024
    tn = max(8, (budget // (c_pad * itemsize)) // 8 * 8)
    tn = min(tn, 1024)
    tn = min(tn, _round_up(n, 8))
    return tn


def _make_focal_kernel(gamma: float, alpha: float, n_true: int, tile_n: int):
    def focal_kernel(x_ref, tgt_ref, o_ref):
        i = pl.program_id(0)

        @pl.when(i == 0)
        def _init():
            o_ref[...] = jnp.zeros_like(o_ref)

        x = x_ref[...].astype(jnp.float32)      # (TN, Cp) logits
        tgt = tgt_ref[...]                      # (TN, 1) int32 labels

        tn, cp = x.shape
        class_ids = jax.lax.broadcasted_iota(jnp.int32, (tn, cp), 1)
        onehot = class_ids == tgt               # (TN, Cp)

        # Numerically-stable log-softmax at the target class.
        zmax = jnp.max(x, axis=1, keepdims=True)                       # (TN,1)
        sumexp = jnp.sum(jnp.exp(x - zmax), axis=1, keepdims=True)     # (TN,1)
        lse = jnp.log(sumexp) + zmax                                   # (TN,1)
        z_t = jnp.sum(jnp.where(onehot, x, 0.0), axis=1, keepdims=True)
        log_pt = z_t - lse                                             # (TN,1)
        pt = jnp.exp(log_pt)                                           # (TN,1)

        # Focal term (alpha is a uniform scalar -> applied once at finalize).
        base = jnp.maximum(1.0 - pt, 0.0)       # guard tiny negative round-off
        term = jnp.power(base, gamma) * log_pt                         # (TN,1)

        # Mask rows beyond the true batch size (last partial tile).
        row_ids = i * tile_n + jax.lax.broadcasted_iota(jnp.int32, (tn, 1), 0)
        term = jnp.where(row_ids < n_true, term, 0.0)

        o_ref[...] += jnp.sum(term, axis=0, keepdims=True)             # (1,1)

        @pl.when(i == pl.num_programs(0) - 1)
        def _finalize():
            o_ref[...] = o_ref[...] * (-alpha / n_true)

    return focal_kernel


def focal_loss(logits, labels, gamma: float, alpha: float):
    """logits: (N, C) float (f32 or bf16), labels: (N,) int. Returns scalar f32."""
    n, c = logits.shape
    c_pad = _round_up(c, 128)
    tile_n = _pick_tile_n(n, c_pad, jnp.dtype(logits.dtype).itemsize)
    grid_n = pl.cdiv(n, tile_n)
    n_pad = grid_n * tile_n

    x = logits
    if c_pad > c:
        # -1e30 padding: never wins the max, exp underflows to exactly 0.
        x = jnp.pad(x, ((0, 0), (0, c_pad - c)), constant_values=-1e30)
    if n_pad > n:
        x = jnp.pad(x, ((0, n_pad - n), (0, 0)))

    tgt = labels.astype(jnp.int32).reshape(n, 1)
    if n_pad > n:
        tgt = jnp.pad(tgt, ((0, n_pad - n), (0, 0)))

    out = pl.pallas_call(
        _make_focal_kernel(float(gamma), float(alpha), n, tile_n),
        out_shape=jax.ShapeDtypeStruct((1, 1), jnp.float32),
        grid=(grid_n,),
        in_specs=[
            pl.BlockSpec((tile_n, c_pad), lambda i: (i, 0)),
            pl.BlockSpec((tile_n, 1), lambda i: (i, 0)),
        ],
        out_specs=pl.BlockSpec((1, 1), lambda i: (0, 0)),
        compiler_params=pltpu.CompilerParams(
            dimension_semantics=("arbitrary",),
            vmem_limit_bytes=32 * 1024 * 1024,
        ),
    )(x, tgt)
    return out[0, 0]


class FocalLossPallas:
    """Mirrors torchsweetie FocalLoss.forward."""

    def __init__(self, gamma: float, alpha: float):
        self.gamma = float(gamma)
        self.alpha = float(alpha)

    def __call__(self, logits, labels):
        return focal_loss(logits, labels, self.gamma, self.alpha)


if __name__ == "__main__":
    key = jax.random.PRNGKey(0)
    k_x, k_t = jax.random.split(key, 2)

    N, C = 8, 16  # small batch, 16 classes
    gamma, alpha = 2.0, 0.25

    logits = jax.random.normal(k_x, (N, C), dtype=jnp.float32)
    labels = jax.random.randint(k_t, (N,), 0, C, dtype=jnp.int32)

    loss_mod = FocalLossPallas(gamma, alpha)
    loss = loss_mod(logits, labels)
    jax.block_until_ready(loss)

    # Plain-JAX reference with identical semantics.
    probs = jax.nn.softmax(logits, axis=1)
    p_t = jnp.take_along_axis(probs, labels.reshape(-1, 1), axis=1)
    ref = -jnp.mean(alpha * jnp.power(1.0 - p_t, gamma) * jnp.log(p_t))
    assert jnp.allclose(loss, ref, atol=1e-5, rtol=1e-5), (loss, ref)

    print("KERNEL_OK")
</pallas_src>

<mosaic_0001>
module attributes {stable_mosaic.version = 11 : i64} {
  func.func @focal_kernel(%arg0: i32, %arg1: memref<8x128xf32, #tpu.memory_space<vmem>>, %arg2: memref<8x1xi32, #tpu.memory_space<vmem>>, %arg3: memref<1x1xf32, #tpu.memory_space<vmem>>) attributes {dimension_semantics = [#tpu.dimension_semantics<arbitrary>], iteration_bounds = array<i64: 1>, scalar_prefetch = 0 : i64, scratch_operands = 0 : i64, tpu.core_type = #tpu.core_type<tc>, window_params = [{transform_indices = @transform_0, window_bounds = array<i64: 8, 128>}, {transform_indices = @transform_1, window_bounds = array<i64: 8, 1>}, {pipeline_mode = #tpu.pipeline_mode<synchronous>, transform_indices = @transform_2, window_bounds = array<i64: 1, 1>}]} {
    %c0_i32 = arith.constant 0 : i32
    %0 = arith.cmpi eq, %arg0, %c0_i32 : i32
    %1 = arith.extui %0 : i1 to i32
    %c0_i32_0 = arith.constant 0 : i32
    %2 = arith.cmpi ne, %1, %c0_i32_0 : i32
    scf.if %2 {
      %cst_19 = arith.constant 0.000000e+00 : f32
      %46 = vector.broadcast %cst_19 : f32 to vector<1x1xf32>
      %c0_20 = arith.constant 0 : index
      %c0_21 = arith.constant 0 : index
      %47 = vector.load %arg3[%c0_20, %c0_21] : memref<1x1xf32, #tpu.memory_space<vmem>>, vector<1x1xf32>
      tpu.vector_store %arg3[%c0_20, %c0_21], %46 {strides = array<i32>} : memref<1x1xf32, #tpu.memory_space<vmem>>, vector<1x1xf32>,
    } else {
    }
    %c0 = arith.constant 0 : index
    %c0_1 = arith.constant 0 : index
    %3 = vector.load %arg1[%c0, %c0_1] : memref<8x128xf32, #tpu.memory_space<vmem>>, vector<8x128xf32>
    %c0_2 = arith.constant 0 : index
    %c0_3 = arith.constant 0 : index
    %4 = vector.load %arg2[%c0_2, %c0_3] : memref<8x1xi32, #tpu.memory_space<vmem>>, vector<8x1xi32>
    %5 = tpu.iota {dimensions = array<i32: 1>} : vector<8x128xi32>
    %6 = vector.broadcast %4 : vector<8x1xi32> to vector<8x128xi32>
    %7 = arith.cmpi eq, %5, %6 : vector<8x128xi32>
    %cst = arith.constant dense<0xFF800000> : vector<8xf32>
    %8 = vector.multi_reduction <maximumf>, %3, %cst [1] : vector<8x128xf32> to vector<8xf32>
    %9 = vector.shape_cast %8 : vector<8xf32> to vector<8x1xf32>
    %10 = vector.broadcast %9 : vector<8x1xf32> to vector<8x128xf32>
    %11 = arith.subf %3, %10 : vector<8x128xf32>
    %12 = math.exp %11 : vector<8x128xf32>
    %cst_4 = arith.constant dense<0.000000e+00> : vector<8xf32>
    %13 = vector.multi_reduction <add>, %12, %cst_4 [1] : vector<8x128xf32> to vector<8xf32>
    %14 = vector.shape_cast %13 : vector<8xf32> to vector<8x1xf32>
    %15 = math.log %14 : vector<8x1xf32>
    %16 = arith.addf %15, %9 : vector<8x1xf32>
    %cst_5 = arith.constant 0.000000e+00 : f32
    %17 = vector.broadcast %cst_5 : f32 to vector<8x128xf32>
    %18 = arith.select %7, %3, %17 : vector<8x128xi1>, vector<8x128xf32>
    %cst_6 = arith.constant dense<0.000000e+00> : vector<8xf32>
    %19 = vector.multi_reduction <add>, %18, %cst_6 [1] : vector<8x128xf32> to vector<8xf32>
    %20 = vector.shape_cast %19 : vector<8xf32> to vector<8x1xf32>
    %21 = arith.subf %20, %16 : vector<8x1xf32>
    %22 = math.exp %21 : vector<8x1xf32>
    %cst_7 = arith.constant 1.000000e+00 : f32
    %23 = vector.broadcast %cst_7 : f32 to vector<8x1xf32>
    %24 = arith.subf %23, %22 : vector<8x1xf32>
    %cst_8 = arith.constant 0.000000e+00 : f32
    %25 = vector.broadcast %cst_8 : f32 to vector<8x1xf32>
    %26 = arith.maximumf %24, %25 : vector<8x1xf32>
    %cst_9 = arith.constant 2.000000e+00 : f32
    %27 = vector.broadcast %cst_9 : f32 to vector<8x1xf32>
    %28 = math.powf %26, %27 : vector<8x1xf32>
    %29 = arith.mulf %28, %21 : vector<8x1xf32>
    %c8_i32 = arith.constant 8 : i32
    %30 = arith.muli %arg0, %c8_i32 : i32
    %31 = tpu.iota {dimensions = array<i32: 0>} : vector<8x1xi32>
    %32 = vector.broadcast %30 : i32 to vector<8x1xi32>
    %33 = arith.addi %32, %31 : vector<8x1xi32>
    %c8_i32_10 = arith.constant 8 : i32
    %34 = vector.broadcast %c8_i32_10 : i32 to vector<8x1xi32>
    %35 = arith.cmpi slt, %33, %34 : vector<8x1xi32>
    %cst_11 = arith.constant 0.000000e+00 : f32
    %36 = vector.broadcast %cst_11 : f32 to vector<8x1xf32>
    %37 = arith.select %35, %29, %36 : vector<8x1xi1>, vector<8x1xf32>
    %c0_12 = arith.constant 0 : index
    %c0_13 = arith.constant 0 : index
    %38 = vector.load %arg3[%c0_12, %c0_13] : memref<1x1xf32, #tpu.memory_space<vmem>>, vector<1x1xf32>
    %cst_14 = arith.constant dense<0.000000e+00> : vector<1xf32>
    %39 = vector.multi_reduction <add>, %37, %cst_14 [0] : vector<8x1xf32> to vector<1xf32>
    %40 = vector.shape_cast %39 : vector<1xf32> to vector<1x1xf32>
    %41 = arith.addf %38, %40 : vector<1x1xf32>
    %c0_15 = arith.constant 0 : index
    %c0_16 = arith.constant 0 : index
    %42 = vector.load %arg3[%c0_15, %c0_16] : memref<1x1xf32, #tpu.memory_space<vmem>>, vector<1x1xf32>
    tpu.vector_store %arg3[%c0_15, %c0_16], %41 {strides = array<i32>} : memref<1x1xf32, #tpu.memory_space<vmem>>, vector<1x1xf32>,
    %c0_i32_17 = arith.constant 0 : i32
    %43 = arith.cmpi eq, %arg0, %c0_i32_17 : i32
    %44 = arith.extui %43 : i1 to i32
    %c0_i32_18 = arith.constant 0 : i32
    %45 = arith.cmpi ne, %44, %c0_i32_18 : i32
    scf.if %45 {
      %c0_19 = arith.constant 0 : index
      %c0_20 = arith.constant 0 : index
      %46 = vector.load %arg3[%c0_19, %c0_20] : memref<1x1xf32, #tpu.memory_space<vmem>>, vector<1x1xf32>
      %cst_21 = arith.constant -3.125000e-02 : f32
      %47 = vector.broadcast %cst_21 : f32 to vector<1x1xf32>
      %48 = arith.mulf %46, %47 : vector<1x1xf32>
      %c0_22 = arith.constant 0 : index
      %c0_23 = arith.constant 0 : index
      %49 = vector.load %arg3[%c0_22, %c0_23] : memref<1x1xf32, #tpu.memory_space<vmem>>, vector<1x1xf32>
      tpu.vector_store %arg3[%c0_22, %c0_23], %48 {strides = array<i32>} : memref<1x1xf32, #tpu.memory_space<vmem>>, vector<1x1xf32>,
    } else {
    }
    return
  }
  func.func @transform_0(%arg0: i32) -> (i32, i32) {
    %c0_i32 = arith.constant 0 : i32
    %c0_i32_0 = arith.constant 0 : i32
    return %arg0, %c0_i32 : i32, i32
  }
  func.func @transform_1(%arg0: i32) -> (i32, i32) {
    %c0_i32 = arith.constant 0 : i32
    %c0_i32_0 = arith.constant 0 : i32
    return %arg0, %c0_i32 : i32, i32
  }
  func.func @transform_2(%arg0: i32) -> (i32, i32) {
    %c0_i32 = arith.constant 0 : i32
    %c0_i32_0 = arith.constant 0 : i32
    %c0_i32_1 = arith.constant 0 : i32
    return %c0_i32, %c0_i32_0 : i32, i32
  }
}

</mosaic_0001>

<llo_original>
// kernel: tpu_custom_call.1
$region0: #{tpu_custom_call.1}
  #allocation0 [shape = 'u32[]', space=smem, size = 0x4, offset = 0x4, fixed_abs, tag = 'smem constant byte address 0x4 - core index']
  #allocation1 [shape = 'u32[144,128]{1,0:T(1,128)}', space=vmem, size = 0x12000, scoped, tag = 'internal scratch']
  %s0 = inlined_call_operand.vmem [shape: f32[8,128], index: 0, kind: input, shape index: {}]
  %s1 = inlined_call_operand.vmem [shape: s32[8,1], index: 1, kind: input, shape index: {}]
  %s2 = inlined_call_operand.hbm [shape: f32[1,1], index: 2, kind: output, shape index: {}]
  %s3 = sld [smem:[#allocation0]]
  $region26: #{tpu_custom_call.1} parent=0
    _
  %s5 = ssub.s32 1, %s3
  %s6 = scalar_select 0, %s5, %s3
  $region1: #{tpu_custom_call.1} parent=0
    #allocation2 [shape = 'u8[512]{0}', space=vmem, size = 0x400, scoped, tag = 'output window, operand 0, single buffered']
    #allocation3 [shape = 's32[1]{0}', space=sflag, size = 0x4, scoped, tag = 'scoped memory for tpu_custom_call.1']
    %7 = vsyncpa [#allocation3], 0
    // Predicated region
    $region2: #{tpu_custom_call.1} parent=1 // pred_check
      _
    $region3: #{tpu_custom_call.1} parent=1 // pred_check_branch
      %9 = sbr.rel (0) target = $region5
    $region4: #{tpu_custom_call.1} parent=1 // pred_region
      _
    $region5: #{tpu_custom_call.1} parent=1 // pred_fallthru
      _
    // Predicated region
    $region6: #{tpu_custom_call.1} parent=1 // pred_check
      _
    $region7: #{tpu_custom_call.1} parent=1 // pred_check_branch
      %11 = sbr.rel (0) target = $region9
    $region8: #{tpu_custom_call.1} parent=1 // pred_region
      _
    $region9: #{tpu_custom_call.1} parent=1 // pred_fallthru
      _
    %p12 = scmp.eq.s32.totalorder 0, 0
    // Predicated region
    $region10: #{tpu_custom_call.1} parent=1 // pred_check
      %p13 = pneg %p12
    $region11: #{tpu_custom_call.1} parent=1 // pred_check_branch
      %15 = sbr.rel (%p13) target = $region13
    $region12: #{tpu_custom_call.1} parent=1 // pred_region
      %vm16 = vcmask 0
      %17 = vst.msk [vmem:[#allocation2] sm:$0x1] %vm16, 0.0
    $region13: #{tpu_custom_call.1} parent=1 // pred_fallthru
      _
    %v18 = vld [vmem:[%s0] sm:$0xff]
    %v19 = vld [vmem:[%s1] sm:$0xff]
    %v20 = vlaneseq
    %v21 = vand.u32 %v20, 127
    %22 = vset.pattern.permute.xlu0 0
    %23 = vperm.xlu0 %22, %v19
    %v24 = vpop.permute.xlu0 %23
    %vm25 = vcmp.eq.s32.totalorder %v21, %v24
    %26 = vmax.xlane.f32.xlu0 %v18
    %v27 = vpop.xlane.xlu0 %26
    %v28 = vsub.f32 %v18, %v27
    %v29 = vmul.f32 %v28, 1.442695
    %v30 = vpow.pop %v29
    %31 = vadd.xlane.f32.xlu0 %v30
    %v32 = vpop.xlane.xlu0 %31
    %v33 = vlog2.pop %v32
    %v34 = vmul.f32 %v33, 0.6931472
    %v35 = vadd.f32 %v34, %v27
    %v36 = vsel %vm25, %v18, 0.0
    %37 = vadd.xlane.f32.xlu0 %v36
    %v38 = vpop.xlane.xlu0 %37
    %v39 = vsub.f32 %v38, %v35
    %v40 = vmul.f32 %v39, 1.442695
    %v41 = vpow.pop %v40
    %v42 = vsub.f32 1.0, %v41
    %v43 = vmax.f32 %v42, 0.0
    %v44 = vpow.f32 %v43, 2.0
    %v45 = vmul.f32 %v44, %v39
    %s46 = smul.u32 0, 8
    %v47 = vlaneseq
    %v48 = vshrl.u32 %v47, 7
    %v49 = vstv %s46
    %v50 = vadd.s32 %v49, %v48
    %vm51 = vcmp.lt.s32.totalorder %v50, 8
    %v52 = vsel %vm51, %v45, 0.0
    %v53 = vld [vmem:[#allocation2] sm:$0x1]
    %v54 = vrot.slane %v52, 4
    %v55 = vadd.f32 %v52, %v54
    %v56 = vrot.slane %v55, 2
    %v57 = vadd.f32 %v55, %v56
    %v58 = vrot.slane %v57, 1
    %v59 = vadd.f32 %v57, %v58
    %v60 = vadd.f32 %v53, %v59
    %vm61 = vcmask 0
    %62 = vst.msk [vmem:[#allocation2] sm:$0x1] %vm61, %v60
    // Predicated region
    $region14: #{tpu_custom_call.1} parent=1 // pred_check
      %p63 = pneg %p12
    $region15: #{tpu_custom_call.1} parent=1 // pred_check_branch
      %65 = sbr.rel (%p63) target = $region17
    $region16: #{tpu_custom_call.1} parent=1 // pred_region
      %v66 = vld [vmem:[#allocation2] sm:$0x1]
      %v67 = vmul.f32 %v66, -0.03125
      %68 = vst.msk [vmem:[#allocation2] sm:$0x1] %vm61, %v67
    $region17: #{tpu_custom_call.1} parent=1 // pred_fallthru
      _
    // Predicated region
    $region18: #{tpu_custom_call.1} parent=1 // pred_check
      _
    $region19: #{tpu_custom_call.1} parent=1 // pred_check_branch
      %70 = sbr.rel (0) target = $region21
    $region20: #{tpu_custom_call.1} parent=1 // pred_region
      %s72 = ssub.s32 16, 16
      %73 = vsyncadd [#allocation3], %s72
      %s75 = sshll.u32 [#allocation2], 4
      %s76 = int_to_ptr.vmem [resolvable:$true] %s75
      %78 = dma.vmem_to_hbm [thread:$0]  %s76, 16, %s2, [#allocation3]
    $region21: #{tpu_custom_call.1} parent=1 // pred_fallthru
      _
    // Predicated region
    $region22: #{tpu_custom_call.1} parent=1 // pred_check
      _
    $region23: #{tpu_custom_call.1} parent=1 // pred_check_branch
      %80 = sbr.rel (0) target = $region25
    $region24: #{tpu_custom_call.1} parent=1 // pred_region
      %81 = dma.done [#allocation3], 16
    $region25: #{tpu_custom_call.1} parent=1 // pred_fallthru
      _
    %82 = vsyncpa [#allocation3], 1

</llo_original>
